<compile_context>
chip_gen: v6e
topology: v6e:2x2x1
jax: 0.10.0
libtpu: 0.0.40
codegen_flags: <defaults>
</compile_context>

<pallas_src>
import jax
import jax.numpy as jnp
from jax.experimental import pallas as pl
from jax.experimental.pallas import tpu as pltpu


def _round_up(n, m):
    return ((n + m - 1) // m) * m


def sac_policy_kernel(x_ref, w1_ref, b1_ref, w2_ref, b2_ref, w3_ref, b3_ref,
                      out_ref):
    """One batch tile: 3 matmuls (bf16 MXU) + ReLU + row-wise softmax (f32)."""
    # bf16 only for the MXU operands; accumulate and do elementwise work in f32.
    x = x_ref[...].astype(jnp.bfloat16)

    # fc1 + ReLU
    h1 = jnp.dot(x, w1_ref[...], preferred_element_type=jnp.float32)
    h1 = jnp.maximum(h1 + b1_ref[...], 0.0)

    # fc2 + ReLU
    h2 = jnp.dot(h1.astype(jnp.bfloat16), w2_ref[...],
                 preferred_element_type=jnp.float32)
    h2 = jnp.maximum(h2 + b2_ref[...], 0.0)

    # fc3 logits
    logits = jnp.dot(h2.astype(jnp.bfloat16), w3_ref[...],
                     preferred_element_type=jnp.float32)
    logits = logits + b3_ref[...]

    # softmax along dim=1 (action axis), numerically stable
    m = jnp.max(logits, axis=1, keepdims=True)
    e = jnp.exp(logits - m)
    denom = jnp.sum(e, axis=1, keepdims=True)
    # approx reciprocal -> EUP slot (otherwise idle); ~1e-3 relative error.
    out_ref[...] = (e * pl.reciprocal(denom, approx=True)).astype(out_ref.dtype)


def sac_policy_forward_pallas(x, params, *, block_batch=512):
    """Pallas forward pass. x: (batch, state_dim) f32 (or bf16)."""
    w1, b1, w2, b2, w3, b3 = params
    batch, state_dim = x.shape
    hidden_dim = w1.shape[1]
    action_dim = w3.shape[1]

    # Batch tile: multiple of 8 sublanes (f32), capped at block_batch.
    tb = min(block_batch, _round_up(max(batch, 1), 8))
    tb = _round_up(tb, 8)
    padded = _round_up(batch, tb)
    if padded != batch:
        x = jnp.pad(x, ((0, padded - batch), (0, 0)))
    grid = (padded // tb,)

    # Weights/biases: whole-array blocks, constant index_map -> VMEM-resident
    # across all grid iterations (DMA'd once).
    def resident(arr):
        return pl.BlockSpec(arr.shape, lambda i: (0, 0))

    # MXU operands in bf16; biases stay f32 (added to f32 accumulators).
    w1b = w1.astype(jnp.bfloat16)
    w2b = w2.astype(jnp.bfloat16)
    w3b = w3.astype(jnp.bfloat16)

    flops = 2 * padded * (state_dim * hidden_dim
                          + hidden_dim * hidden_dim
                          + hidden_dim * action_dim)
    bytes_accessed = int(
        x.size * x.dtype.itemsize                      # x stream in
        + padded * action_dim * 4                      # probs stream out (f32)
        + sum(a.size * a.dtype.itemsize
              for a in (w1b, b1, w2b, b2, w3b, b3)))   # resident params (once)

    out = pl.pallas_call(
        sac_policy_kernel,
        out_shape=jax.ShapeDtypeStruct((padded, action_dim), jnp.float32),
        grid=grid,
        in_specs=[
            pl.BlockSpec((tb, state_dim), lambda i: (i, 0)),  # streamed x tile
            resident(w1b), resident(b1),
            resident(w2b), resident(b2),
            resident(w3b), resident(b3),
        ],
        out_specs=pl.BlockSpec((tb, action_dim), lambda i: (i, 0)),
        compiler_params=pltpu.CompilerParams(
            # batch axis is embarrassingly parallel -> megacore sharding on v7x
            dimension_semantics=("parallel",)),
        cost_estimate=pl.CostEstimate(
            flops=flops,
            transcendentals=padded * (action_dim + 1),  # exp + reciprocal
            bytes_accessed=bytes_accessed),
    )(x, w1b, b1, w2b, b2, w3b, b3)

    return out[:batch] if padded != batch else out


def sac_policy_forward(x, params, *, min_pallas_batch=256, block_batch=512):
    """Dispatcher: tiny batches go through plain XLA (launch overhead dominates),
    larger batches use the Pallas streaming kernel."""
    if x.shape[0] < min_pallas_batch:
        return reference_forward(x, params)
    return sac_policy_forward_pallas(x, params, block_batch=block_batch)


def init_params(key, state_dim, hidden_dim, action_dim):
    """Deterministic init mimicking PyTorch Linear default (U[-1/sqrt(fan_in), +])."""
    ks = jax.random.split(key, 6)

    def linear(kw, kb, fan_in, fan_out):
        bound = 1.0 / jnp.sqrt(jnp.float32(fan_in))
        # stored as (in_dim, out_dim) so kernel does x @ W (== PyTorch x @ W.T)
        w = jax.random.uniform(kw, (fan_in, fan_out), jnp.float32, -bound, bound)
        b = jax.random.uniform(kb, (1, fan_out), jnp.float32, -bound, bound)
        return w, b

    w1, b1 = linear(ks[0], ks[1], state_dim, hidden_dim)
    w2, b2 = linear(ks[2], ks[3], hidden_dim, hidden_dim)
    w3, b3 = linear(ks[4], ks[5], hidden_dim, action_dim)
    return (w1, b1, w2, b2, w3, b3)


def reference_forward(x, params):
    """Pure-JAX f32 reference for correctness check."""
    w1, b1, w2, b2, w3, b3 = params
    h1 = jnp.maximum(x @ w1 + b1, 0.0)
    h2 = jnp.maximum(h1 @ w2 + b2, 0.0)
    logits = h2 @ w3 + b3
    return jax.nn.softmax(logits, axis=1)


def _check(out, ref, batch, action_dim):
    assert out.shape == (batch, action_dim)
    # rows of a softmax must sum to ~1 (approx reciprocal -> ~1e-3 slack)
    assert jnp.allclose(jnp.sum(out, axis=1), 1.0, atol=5e-3)
    # bf16 MXU operands + approx reciprocal vs f32 reference
    assert jnp.allclose(out, ref, atol=2e-2, rtol=2e-2)


if __name__ == "__main__":
    # Small shapes consistent with the module: state_dim=8, hidden=32, actions=4
    state_dim, hidden_dim, action_dim = 8, 32, 4

    key = jax.random.PRNGKey(0)
    k_params, k_x1, k_x2 = jax.random.split(key, 3)
    params = init_params(k_params, state_dim, hidden_dim, action_dim)

    # 1) tiny batch (single padded tile, grid=1)
    batch1 = 2
    x1 = jax.random.normal(k_x1, (batch1, state_dim), dtype=jnp.float32)
    out1 = jax.block_until_ready(sac_policy_forward_pallas(x1, params))
    _check(out1, reference_forward(x1, params), batch1, action_dim)

    # 2) multi-step grid with tail padding (batch=40, TB=16 -> grid=3)
    batch2 = 40
    x2 = jax.random.normal(k_x2, (batch2, state_dim), dtype=jnp.float32)
    out2 = jax.block_until_ready(
        sac_policy_forward_pallas(x2, params, block_batch=16))
    _check(out2, reference_forward(x2, params), batch2, action_dim)

    print("KERNEL_OK")
</pallas_src>

<mosaic_0001>
module attributes {stable_mosaic.version = 11 : i64} {
  func.func @sac_policy_kernel(%arg0: i32, %arg1: memref<8x8xf32, #tpu.memory_space<vmem>>, %arg2: memref<8x32xbf16, #tpu.memory_space<vmem>>, %arg3: memref<1x32xf32, #tpu.memory_space<vmem>>, %arg4: memref<32x32xbf16, #tpu.memory_space<vmem>>, %arg5: memref<1x32xf32, #tpu.memory_space<vmem>>, %arg6: memref<32x4xbf16, #tpu.memory_space<vmem>>, %arg7: memref<1x4xf32, #tpu.memory_space<vmem>>, %arg8: memref<8x4xf32, #tpu.memory_space<vmem>>) attributes {dimension_semantics = [#tpu.dimension_semantics<parallel>], iteration_bounds = array<i64: 1>, scalar_prefetch = 0 : i64, scratch_operands = 0 : i64, tpu.core_type = #tpu.core_type<tc>, window_params = [{transform_indices = @transform_0, window_bounds = array<i64: 8, 8>}, {pipeline_mode = #tpu.pipeline_mode<synchronous>, transform_indices = @transform_1, window_bounds = array<i64: 8, 32>}, {pipeline_mode = #tpu.pipeline_mode<synchronous>, transform_indices = @transform_2, window_bounds = array<i64: 1, 32>}, {pipeline_mode = #tpu.pipeline_mode<synchronous>, transform_indices = @transform_3, window_bounds = array<i64: 32, 32>}, {pipeline_mode = #tpu.pipeline_mode<synchronous>, transform_indices = @transform_4, window_bounds = array<i64: 1, 32>}, {pipeline_mode = #tpu.pipeline_mode<synchronous>, transform_indices = @transform_5, window_bounds = array<i64: 32, 4>}, {pipeline_mode = #tpu.pipeline_mode<synchronous>, transform_indices = @transform_6, window_bounds = array<i64: 1, 4>}, {transform_indices = @transform_7, window_bounds = array<i64: 8, 4>}]} {
    %c0 = arith.constant 0 : index
    %c0_0 = arith.constant 0 : index
    %0 = vector.load %arg1[%c0, %c0_0] : memref<8x8xf32, #tpu.memory_space<vmem>>, vector<8x8xf32>
    %1 = arith.truncf %0 : vector<8x8xf32> to vector<8x8xbf16>
    %c0_1 = arith.constant 0 : index
    %c0_2 = arith.constant 0 : index
    %2 = vector.load %arg2[%c0_1, %c0_2] : memref<8x32xbf16, #tpu.memory_space<vmem>>, vector<8x32xbf16>
    %cst = arith.constant dense<0.000000e+00> : vector<8x32xf32>
    %3 = tpu.matmul %1, %2, %cst {dimension_numbers = #tpu.dot_dimension_numbers<[1], [0], [0], [1], [0, 0, 1, 1], [], []>} : vector<8x8xbf16>, vector<8x32xbf16>, vector<8x32xf32> -> vector<8x32xf32>
    %c0_3 = arith.constant 0 : index
    %c0_4 = arith.constant 0 : index
    %4 = vector.load %arg3[%c0_3, %c0_4] : memref<1x32xf32, #tpu.memory_space<vmem>>, vector<1x32xf32>
    %5 = vector.broadcast %4 : vector<1x32xf32> to vector<8x32xf32>
    %6 = arith.addf %3, %5 : vector<8x32xf32>
    %cst_5 = arith.constant 0.000000e+00 : f32
    %7 = vector.broadcast %cst_5 : f32 to vector<8x32xf32>
    %8 = arith.maximumf %6, %7 : vector<8x32xf32>
    %9 = arith.truncf %8 : vector<8x32xf32> to vector<8x32xbf16>
    %c0_6 = arith.constant 0 : index
    %c0_7 = arith.constant 0 : index
    %10 = vector.load %arg4[%c0_6, %c0_7] : memref<32x32xbf16, #tpu.memory_space<vmem>>, vector<32x32xbf16>
    %cst_8 = arith.constant dense<0.000000e+00> : vector<8x32xf32>
    %11 = tpu.matmul %9, %10, %cst_8 {dimension_numbers = #tpu.dot_dimension_numbers<[1], [0], [0], [1], [0, 0, 1, 1], [], []>} : vector<8x32xbf16>, vector<32x32xbf16>, vector<8x32xf32> -> vector<8x32xf32>
    %c0_9 = arith.constant 0 : index
    %c0_10 = arith.constant 0 : index
    %12 = vector.load %arg5[%c0_9, %c0_10] : memref<1x32xf32, #tpu.memory_space<vmem>>, vector<1x32xf32>
    %13 = vector.broadcast %12 : vector<1x32xf32> to vector<8x32xf32>
    %14 = arith.addf %11, %13 : vector<8x32xf32>
    %cst_11 = arith.constant 0.000000e+00 : f32
    %15 = vector.broadcast %cst_11 : f32 to vector<8x32xf32>
    %16 = arith.maximumf %14, %15 : vector<8x32xf32>
    %17 = arith.truncf %16 : vector<8x32xf32> to vector<8x32xbf16>
    %c0_12 = arith.constant 0 : index
    %c0_13 = arith.constant 0 : index
    %18 = vector.load %arg6[%c0_12, %c0_13] : memref<32x4xbf16, #tpu.memory_space<vmem>>, vector<32x4xbf16>
    %cst_14 = arith.constant dense<0.000000e+00> : vector<8x4xf32>
    %19 = tpu.matmul %17, %18, %cst_14 {dimension_numbers = #tpu.dot_dimension_numbers<[1], [0], [0], [1], [0, 0, 1, 1], [], []>} : vector<8x32xbf16>, vector<32x4xbf16>, vector<8x4xf32> -> vector<8x4xf32>
    %c0_15 = arith.constant 0 : index
    %c0_16 = arith.constant 0 : index
    %20 = vector.load %arg7[%c0_15, %c0_16] : memref<1x4xf32, #tpu.memory_space<vmem>>, vector<1x4xf32>
    %21 = vector.broadcast %20 : vector<1x4xf32> to vector<8x4xf32>
    %22 = arith.addf %19, %21 : vector<8x4xf32>
    %cst_17 = arith.constant dense<0xFF800000> : vector<8xf32>
    %23 = vector.multi_reduction <maximumf>, %22, %cst_17 [1] : vector<8x4xf32> to vector<8xf32>
    %24 = vector.shape_cast %23 : vector<8xf32> to vector<8x1xf32>
    %25 = vector.broadcast %24 : vector<8x1xf32> to vector<8x4xf32>
    %26 = arith.subf %22, %25 : vector<8x4xf32>
    %27 = math.exp %26 : vector<8x4xf32>
    %cst_18 = arith.constant dense<0.000000e+00> : vector<8xf32>
    %28 = vector.multi_reduction <add>, %27, %cst_18 [1] : vector<8x4xf32> to vector<8xf32>
    %29 = vector.shape_cast %28 : vector<8xf32> to vector<8x1xf32>
    %30 = tpu.reciprocal %29 {approx = true} : vector<8x1xf32> -> vector<8x1xf32>
    %31 = vector.broadcast %30 : vector<8x1xf32> to vector<8x4xf32>
    %32 = arith.mulf %27, %31 : vector<8x4xf32>
    %c0_19 = arith.constant 0 : index
    %c0_20 = arith.constant 0 : index
    %33 = vector.load %arg8[%c0_19, %c0_20] : memref<8x4xf32, #tpu.memory_space<vmem>>, vector<8x4xf32>
    tpu.vector_store %arg8[%c0_19, %c0_20], %32 {strides = array<i32>} : memref<8x4xf32, #tpu.memory_space<vmem>>, vector<8x4xf32>,
    return
  }
  func.func @transform_0(%arg0: i32) -> (i32, i32) {
    %c0_i32 = arith.constant 0 : i32
    %c0_i32_0 = arith.constant 0 : i32
    return %arg0, %c0_i32 : i32, i32
  }
  func.func @transform_1(%arg0: i32) -> (i32, i32) {
    %c0_i32 = arith.constant 0 : i32
    %c0_i32_0 = arith.constant 0 : i32
    %c0_i32_1 = arith.constant 0 : i32
    return %c0_i32, %c0_i32_0 : i32, i32
  }
  func.func @transform_2(%arg0: i32) -> (i32, i32) {
    %c0_i32 = arith.constant 0 : i32
    %c0_i32_0 = arith.constant 0 : i32
    %c0_i32_1 = arith.constant 0 : i32
    return %c0_i32, %c0_i32_0 : i32, i32
  }
  func.func @transform_3(%arg0: i32) -> (i32, i32) {
    %c0_i32 = arith.constant 0 : i32
    %c0_i32_0 = arith.constant 0 : i32
    %c0_i32_1 = arith.constant 0 : i32
    return %c0_i32, %c0_i32_0 : i32, i32
  }
  func.func @transform_4(%arg0: i32) -> (i32, i32) {
    %c0_i32 = arith.constant 0 : i32
    %c0_i32_0 = arith.constant 0 : i32
    %c0_i32_1 = arith.constant 0 : i32
    return %c0_i32, %c0_i32_0 : i32, i32
  }
  func.func @transform_5(%arg0: i32) -> (i32, i32) {
    %c0_i32 = arith.constant 0 : i32
    %c0_i32_0 = arith.constant 0 : i32
    %c0_i32_1 = arith.constant 0 : i32
    return %c0_i32, %c0_i32_0 : i32, i32
  }
  func.func @transform_6(%arg0: i32) -> (i32, i32) {
    %c0_i32 = arith.constant 0 : i32
    %c0_i32_0 = arith.constant 0 : i32
    %c0_i32_1 = arith.constant 0 : i32
    return %c0_i32, %c0_i32_0 : i32, i32
  }
  func.func @transform_7(%arg0: i32) -> (i32, i32) {
    %c0_i32 = arith.constant 0 : i32
    %c0_i32_0 = arith.constant 0 : i32
    return %arg0, %c0_i32 : i32, i32
  }
}

</mosaic_0001>

<llo_original>
// kernel: tpu_custom_call.1
$region0: #{tpu_custom_call.1}
  #allocation0 [shape = 'u32[]', space=smem, size = 0x4, offset = 0x4, fixed_abs, tag = 'smem constant byte address 0x4 - core index']
  #allocation1 [shape = 'u32[144,128]{1,0:T(1,128)}', space=vmem, size = 0x12000, scoped, tag = 'internal scratch']
  %s0 = inlined_call_operand.hbm [shape: f32[8,8], index: 0, kind: input, shape index: {}]
  %s1 = inlined_call_operand.vmem [shape: bf16[8,32], index: 1, kind: input, shape index: {}]
  %s2 = inlined_call_operand.vmem [shape: f32[1,32], index: 2, kind: input, shape index: {}]
  %s3 = inlined_call_operand.vmem [shape: bf16[32,32], index: 3, kind: input, shape index: {}]
  %s4 = inlined_call_operand.vmem [shape: f32[1,32], index: 4, kind: input, shape index: {}]
  %s5 = inlined_call_operand.vmem [shape: bf16[32,4], index: 5, kind: input, shape index: {}]
  %s6 = inlined_call_operand.vmem [shape: f32[1,4], index: 6, kind: input, shape index: {}]
  %s7 = inlined_call_operand.vmem [shape: f32[8,4], index: 7, kind: output, shape index: {}]
  %s8 = sld [smem:[#allocation0]]
  $region42: #{tpu_custom_call.1} parent=0
    _
  %s10 = ssub.s32 1, %s8
  %s11 = scalar_select 0, %s10, %s8
  $region1: #{tpu_custom_call.1} parent=0
    #allocation2 [shape = 'u8[4096]{0}', space=vmem, size = 0x1000, scoped, tag = 'input window, operand 0, single buffered']
    #allocation3 [shape = 's32[1]{0}', space=sflag, size = 0x4, scoped, tag = 'scoped memory for tpu_custom_call.1']
    %12 = vsyncpa [#allocation3], 0
    // Predicated region
    $region2: #{tpu_custom_call.1} parent=1 // pred_check
      _
    $region3: #{tpu_custom_call.1} parent=1 // pred_check_branch
      %14 = sbr.rel (0) target = $region5
    $region4: #{tpu_custom_call.1} parent=1 // pred_region
      %s16 = ssub.s32 128, 128
      %17 = vsyncadd [#allocation3], %s16
      %s19 = sshll.u32 [#allocation2], 4
      %s20 = int_to_ptr.vmem [resolvable:$true] %s19
      %22 = dma.hbm_to_vmem [thread:$0]  %s0, 128, %s20, [#allocation3]
    $region5: #{tpu_custom_call.1} parent=1 // pred_fallthru
      _
    // Predicated region
    $region6: #{tpu_custom_call.1} parent=1 // pred_check
      _
    $region7: #{tpu_custom_call.1} parent=1 // pred_check_branch
      %24 = sbr.rel (0) target = $region9
    $region8: #{tpu_custom_call.1} parent=1 // pred_region
      _
    $region9: #{tpu_custom_call.1} parent=1 // pred_fallthru
      _
    // Predicated region
    $region10: #{tpu_custom_call.1} parent=1 // pred_check
      _
    $region11: #{tpu_custom_call.1} parent=1 // pred_check_branch
      %26 = sbr.rel (0) target = $region13
    $region12: #{tpu_custom_call.1} parent=1 // pred_region
      _
    $region13: #{tpu_custom_call.1} parent=1 // pred_fallthru
      _
    // Predicated region
    $region14: #{tpu_custom_call.1} parent=1 // pred_check
      _
    $region15: #{tpu_custom_call.1} parent=1 // pred_check_branch
      %28 = sbr.rel (0) target = $region17
    $region16: #{tpu_custom_call.1} parent=1 // pred_region
      _
    $region17: #{tpu_custom_call.1} parent=1 // pred_fallthru
      _
    // Predicated region
    $region18: #{tpu_custom_call.1} parent=1 // pred_check
      _
    $region19: #{tpu_custom_call.1} parent=1 // pred_check_branch
      %30 = sbr.rel (0) target = $region21
    $region20: #{tpu_custom_call.1} parent=1 // pred_region
      _
    $region21: #{tpu_custom_call.1} parent=1 // pred_fallthru
      _
    // Predicated region
    $region22: #{tpu_custom_call.1} parent=1 // pred_check
      _
    $region23: #{tpu_custom_call.1} parent=1 // pred_check_branch
      %32 = sbr.rel (0) target = $region25
    $region24: #{tpu_custom_call.1} parent=1 // pred_region
      _
    $region25: #{tpu_custom_call.1} parent=1 // pred_fallthru
      _
    // Predicated region
    $region26: #{tpu_custom_call.1} parent=1 // pred_check
      _
    $region27: #{tpu_custom_call.1} parent=1 // pred_check_branch
      %34 = sbr.rel (0) target = $region29
    $region28: #{tpu_custom_call.1} parent=1 // pred_region
      _
    $region29: #{tpu_custom_call.1} parent=1 // pred_fallthru
      _
    // Predicated region
    $region30: #{tpu_custom_call.1} parent=1 // pred_check
      _
    $region31: #{tpu_custom_call.1} parent=1 // pred_check_branch
      %36 = sbr.rel (0) target = $region33
    $region32: #{tpu_custom_call.1} parent=1 // pred_region
      %37 = dma.done [#allocation3], 128
    $region33: #{tpu_custom_call.1} parent=1 // pred_fallthru
      _
    %v39 = vld [vmem:[#allocation2] sm:$0xff]
    %v40 = vpack.c.bf16 %v39, %v39
    %v41 = vld [vmem:[%s1] sm:$0xf]
    %v42 = vld [vmem:[%s2] sm:$0x1]
    %v44 = vlaneseq
    %v45 = vshrl.u32 %v44, 7
    %v46 = vsub.s32 0, %v45
    %v47 = vrot.slane %v42, %v46
    %vm49 = vcmask 64512
    %v51 = vsel %vm49, %v40, 0
    %vm53 = vcmask 1043456
    %v55 = vsel %vm53, %v41, 0
    %57 = vmatprep.subr.bf16.mxu0 0
    %58 = vmatpush1.bf16.msra.mxu0 0
    %59 = vmatprep.subr.bf16.mxu0 0
    %60 = vmatpush1.bf16.msra.mxu0 0
    %61 = vmatprep.subr.bf16.mxu0 0
    %62 = vmatpush1.bf16.msra.mxu0 0
    %63 = vmatprep.subr.bf16.mxu0 0
    %64 = vmatpush1.bf16.msra.mxu0 0
    %65 = vmatprep.subr.bf16.mxu0 0
    %66 = vmatpush1.bf16.msra.mxu0 0
    %67 = vmatprep.subr.bf16.mxu0 0
    %68 = vmatpush1.bf16.msra.mxu0 0
    %69 = vmatprep.subr.bf16.mxu0 0
    %70 = vmatpush1.bf16.msra.mxu0 0
    %71 = vmatprep.subr.bf16.mxu0 0
    %72 = vmatpush1.bf16.msra.mxu0 %v55
    %73 = vmatprep.subr.bf16.mxu0 0
    %74 = vmatpush2.bf16.msra.mxu0 0
    %75 = vmatprep.subr.bf16.mxu0 0
    %76 = vmatpush2.bf16.msra.mxu0 0
    %77 = vmatprep.subr.bf16.mxu0 0
    %78 = vmatpush2.bf16.msra.mxu0 0
    %79 = vmatprep.subr.bf16.mxu0 0
    %80 = vmatpush2.bf16.msra.mxu0 0
    %81 = vmatprep.subr.bf16.mxu0 0
    %82 = vmatpush2.bf16.msra.mxu0 0
    %83 = vmatprep.subr.bf16.mxu0 0
    %84 = vmatpush2.bf16.msra.mxu0 0
    %85 = vmatprep.subr.bf16.mxu0 0
    %86 = vmatpush2.bf16.msra.mxu0 0
    %87 = vmatprep.subr.bf16.mxu0 0
    %88 = vmatpush2.bf16.msra.mxu0 0
    %89 = vmatprep.mubr.bf16.mxu0 0
    %90 = vmatmul.mubr.bf16.gmra.mxu0 %v51
    %v91 = vpop.f32.mrf.mxu0
    %v92 = vadd.f32 %v47, %v91
    %v93 = vpop.f32.mrf.mxu0
    %v94 = vpop.f32.mrf.mxu0
    %v95 = vpop.f32.mrf.mxu0
    %96 = vdwg.mxu0
    %v97 = vmax.f32 %v92, 0.0
    %v98 = vpack.c.bf16 %v97, %v97
    %v99 = vld [vmem:[%s3] sm:$0xf]
    %v100 = vld [vmem:[%s3 + $0x4] sm:$0xf]
    %v101 = vld [vmem:[%s3 + $0x8] sm:$0xf]
    %v102 = vld [vmem:[%s3 + $0xc] sm:$0xf]
    %v103 = vld [vmem:[%s4] sm:$0x1]
    %v105 = vlaneseq
    %v106 = vshrl.u32 %v105, 7
    %v107 = vsub.s32 0, %v106
    %v108 = vrot.slane %v103, %v107
    %v114 = vunpack.c.l.b16 %v99
    %v115 = vunpack.c.l.b16 %v100
    %v116 = vunpack.c.l.b16 %v101
    %v117 = vunpack.c.l.b16 %v102
    %v118 = vpack.c.b16 %v115, %v114
    %v119 = vpack.c.b16 %v117, %v116
    %vm122 = vcmask 261120
    %v124 = vsel %vm122, %v98, 0
    %126 = vmatprep.subr.bf16.mxu0 0
    %127 = vmatpush1.bf16.msra.mxu0 0
    %128 = vmatprep.subr.bf16.mxu0 0
    %129 = vmatpush1.bf16.msra.mxu0 0
    %130 = vmatprep.subr.bf16.mxu0 0
    %131 = vmatpush1.bf16.msra.mxu0 0
    %132 = vmatprep.subr.bf16.mxu0 0
    %133 = vmatpush1.bf16.msra.mxu0 0
    %134 = vmatprep.subr.bf16.mxu0 0
    %135 = vmatpush1.bf16.msra.mxu0 0
    %136 = vmatprep.subr.bf16.mxu0 0
    %137 = vmatpush1.bf16.msra.mxu0 0
    %138 = vmatprep.subr.bf16.mxu0 0
    %139 = vmatpush1.bf16.msra.mxu0 %v119
    %140 = vmatprep.subr.bf16.mxu0 0
    %141 = vmatpush1.bf16.msra.mxu0 %v118
    %142 = vmatprep.subr.bf16.mxu0 0
    %143 = vmatpush2.bf16.msra.mxu0 0
    %144 = vmatprep.subr.bf16.mxu0 0
    %145 = vmatpush2.bf16.msra.mxu0 0
    %146 = vmatprep.subr.bf16.mxu0 0
    %147 = vmatpush2.bf16.msra.mxu0 0
    %148 = vmatprep.subr.bf16.mxu0 0
    %149 = vmatpush2.bf16.msra.mxu0 0
    %150 = vmatprep.subr.bf16.mxu0 0
    %151 = vmatpush2.bf16.msra.mxu0 0
    %152 = vmatprep.subr.bf16.mxu0 0
    %153 = vmatpush2.bf16.msra.mxu0 0
    %154 = vmatprep.subr.bf16.mxu0 0
    %155 = vmatpush2.bf16.msra.mxu0 0
    %156 = vmatprep.subr.bf16.mxu0 0
    %157 = vmatpush2.bf16.msra.mxu0 0
    %158 = vmatprep.mubr.bf16.mxu0 0
    %159 = vmatmul.mubr.bf16.gmra.mxu0 %v124
    %v160 = vpop.f32.mrf.mxu0
    %v161 = vadd.f32 %v108, %v160
    %v162 = vpop.f32.mrf.mxu0
    %v163 = vpop.f32.mrf.mxu0
    %v164 = vpop.f32.mrf.mxu0
    %165 = vdwg.mxu0
    %v166 = vmax.f32 %v161, 0.0
    %v167 = vpack.c.bf16 %v166, %v166
    %v168 = vld [vmem:[%s5] sm:$0xf]
    %v169 = vld [vmem:[%s5 + $0x4] sm:$0xf]
    %v170 = vld [vmem:[%s5 + $0x8] sm:$0xf]
    %v171 = vld [vmem:[%s5 + $0xc] sm:$0xf]
    %v172 = vld [vmem:[%s6] sm:$0x1]
    %v174 = vlaneseq
    %v175 = vshrl.u32 %v174, 7
    %v176 = vsub.s32 0, %v175
    %v177 = vrot.slane %v172, %v176
    %v183 = vunpack.c.l.b16 %v168
    %v184 = vunpack.c.l.b16 %v169
    %v185 = vunpack.c.l.b16 %v170
    %v186 = vunpack.c.l.b16 %v171
    %v187 = vpack.c.b16 %v184, %v183
    %v188 = vpack.c.b16 %v186, %v185
    %v192 = vsel %vm122, %v167, 0
    %194 = vmatprep.subr.bf16.mxu0 0
    %195 = vmatpush1.bf16.msra.mxu0 0
    %196 = vmatprep.subr.bf16.mxu0 0
    %197 = vmatpush1.bf16.msra.mxu0 0
    %198 = vmatprep.subr.bf16.mxu0 0
    %199 = vmatpush1.bf16.msra.mxu0 0
    %200 = vmatprep.subr.bf16.mxu0 0
    %201 = vmatpush1.bf16.msra.mxu0 0
    %202 = vmatprep.subr.bf16.mxu0 0
    %203 = vmatpush1.bf16.msra.mxu0 0
    %204 = vmatprep.subr.bf16.mxu0 0
    %205 = vmatpush1.bf16.msra.mxu0 0
    %206 = vmatprep.subr.bf16.mxu0 0
    %207 = vmatpush1.bf16.msra.mxu0 %v188
    %208 = vmatprep.subr.bf16.mxu0 0
    %209 = vmatpush1.bf16.msra.mxu0 %v187
    %210 = vmatprep.subr.bf16.mxu0 0
    %211 = vmatpush2.bf16.msra.mxu0 0
    %212 = vmatprep.subr.bf16.mxu0 0
    %213 = vmatpush2.bf16.msra.mxu0 0
    %214 = vmatprep.subr.bf16.mxu0 0
    %215 = vmatpush2.bf16.msra.mxu0 0
    %216 = vmatprep.subr.bf16.mxu0 0
    %217 = vmatpush2.bf16.msra.mxu0 0
    %218 = vmatprep.subr.bf16.mxu0 0
    %219 = vmatpush2.bf16.msra.mxu0 0
    %220 = vmatprep.subr.bf16.mxu0 0
    %221 = vmatpush2.bf16.msra.mxu0 0
    %222 = vmatprep.subr.bf16.mxu0 0
    %223 = vmatpush2.bf16.msra.mxu0 0
    %224 = vmatprep.subr.bf16.mxu0 0
    %225 = vmatpush2.bf16.msra.mxu0 0
    %226 = vmatprep.mubr.bf16.mxu0 0
    %227 = vmatmul.mubr.bf16.gmra.mxu0 %v192
    %v228 = vpop.f32.mrf.mxu0
    %v229 = vadd.f32 %v177, %v228
    %v230 = vpop.f32.mrf.mxu0
    %v231 = vpop.f32.mrf.mxu0
    %v232 = vpop.f32.mrf.mxu0
    %233 = vdwg.mxu0
    %vm234 = vcmask 31744
    %v235 = vsel %vm234, %v229, -inf
    %236 = vmax.xlane.f32.xlu0 %v235
    %v237 = vpop.xlane.xlu0 %236
    %v238 = vsub.f32 %v229, %v237
    %v239 = vmul.f32 %v238, 1.442695
    %v240 = vpow.pop %v239
    %v241 = vsel %vm234, %v240, 0.0
    %242 = vadd.xlane.f32.xlu0 %v241
    %v243 = vpop.xlane.xlu0 %242
    %v244 = vrcp.pop %v243
    %v245 = vmul.f32 %v240, %v244
    %246 = vst.msk [vmem:[%s7] sm:$0xff] %vm234, %v245
    // Predicated region
    $region34: #{tpu_custom_call.1} parent=1 // pred_check
      _
    $region35: #{tpu_custom_call.1} parent=1 // pred_check_branch
      %248 = sbr.rel (0) target = $region37
    $region36: #{tpu_custom_call.1} parent=1 // pred_region
      _
    $region37: #{tpu_custom_call.1} parent=1 // pred_fallthru
      _
    // Predicated region
    $region38: #{tpu_custom_call.1} parent=1 // pred_check
      _
    $region39: #{tpu_custom_call.1} parent=1 // pred_check_branch
      %250 = sbr.rel (0) target = $region41
    $region40: #{tpu_custom_call.1} parent=1 // pred_region
      _
    $region41: #{tpu_custom_call.1} parent=1 // pred_fallthru
      _
    %251 = vsyncpa [#allocation3], 1

</llo_original>
